<compile_context>
chip_gen: v6e
topology: v6e:2x2x1
jax: 0.10.0
libtpu: 0.0.40
codegen_flags: <defaults>
</compile_context>

<pallas_src>
import functools

import numpy as np
import jax
import jax.numpy as jnp
from jax.experimental import pallas as pl
from jax.experimental.pallas import tpu as pltpu

_LANES = 128


def _build_pe_table(d_model: int, max_len: int = 10000) -> jnp.ndarray:
    """Deterministic sinusoidal table, identical to the PyTorch __init__."""
    # Like the PyTorch original, this requires an even d_model.
    assert d_model % 2 == 0, "PositionalEncoding requires an even d_model"
    position = np.arange(0, max_len, dtype=np.float32)[:, None]            # (max_len, 1)
    div_term = np.exp(
        np.arange(0, d_model, 2, dtype=np.float32) * (-np.log(10000.0) / d_model)
    )                                                                       # (d_model//2,)
    pe = np.zeros((max_len, d_model), dtype=np.float32)
    pe[:, 0::2] = np.sin(position * div_term)
    pe[:, 1::2] = np.cos(position * div_term)
    return jnp.asarray(pe)                                                  # (max_len, d_model)


def _sublanes(dtype) -> int:
    """Rows per sublane-packed vreg tile for this dtype (f32->8, bf16->16, i8->32)."""
    return max(8, 32 // jnp.dtype(dtype).itemsize)


def _padded_row_bytes(rows: int, dtype) -> int:
    """Bytes per lane-column of one block after Mosaic sublane padding."""
    sub = _sublanes(dtype)
    return ((rows + sub - 1) // sub) * sub * jnp.dtype(dtype).itemsize


def _device_tuning():
    """(target padded x-block bytes, preferred min grid steps) per chip generation."""
    try:
        kind = jax.devices()[0].device_kind.lower()
    except Exception:  # pragma: no cover - e.g. interpret mode on CPU
        return 4 << 20, 4
    if "v5" in kind:
        return 2 << 20, 2    # ~820 GB/s: 2 MiB blocks already amortize step overhead
    if "v6" in kind:
        return 4 << 20, 2    # single TC, plenty of VMEM
    return 4 << 20, 4        # v7x+: 2 TCs -> want >=2 steps per core


def _fold_factor(batch: int, seq: int, target_rows: int) -> int:
    """Largest divisor g of seq with batch*g <= target_rows (sublane packing)."""
    if batch >= target_rows:
        return 1
    for g in range(target_rows // batch, 0, -1):
        if seq % g == 0:
            return g
    return 1


def _choose_tile(lane_len: int, x_rows: int, pe_rows: int,
                 x_dtype, pe_dtype, out_dtype,
                 vmem_budget_bytes: int = 24 * 1024 * 1024) -> int:
    """Lane-multiple tile length; VMEM budget counts sublane padding + double buffering."""
    target_tile_bytes, min_steps = _device_tuning()

    # Padded bytes per lane-column for x block + out block + pe block.
    bytes_per_lane = (_padded_row_bytes(x_rows, x_dtype)
                      + _padded_row_bytes(x_rows, out_dtype)
                      + _padded_row_bytes(pe_rows, pe_dtype))

    # Double-buffered pipeline: 2 live copies of every block.
    cap = max(_LANES, (vmem_budget_bytes // (2 * bytes_per_lane)) // _LANES * _LANES)

    # Aim for ~target_tile_bytes of *padded* x-block per step.
    x_bpl = _padded_row_bytes(x_rows, x_dtype)
    tgt = max(_LANES, (target_tile_bytes // x_bpl) // _LANES * _LANES)

    tl = min(cap, tgt)

    # Prefer >= min_steps grid steps when the input is big enough (pipelining,
    # and megacore sharding on v7x), but never below one lane-group.
    if lane_len >= min_steps * _LANES:
        per_step = ((lane_len + min_steps - 1) // min_steps + _LANES - 1) // _LANES * _LANES
        tl = min(tl, max(_LANES, per_step))

    if tl >= lane_len:
        return lane_len        # single full-extent block (always a legal block shape)
    return tl                  # multiple of 128; partial edge block handled by Pallas


def _pe_add_kernel(x_ref, pe_ref, o_ref, *, batch):
    # x_ref: (B*g, tl), pe_ref: (g, tl)  ->  replicate pe over the batch groups.
    pe = pe_ref[...]
    if pe_ref.shape[0] not in (1, x_ref.shape[0]):
        pe = jnp.tile(pe, (batch, 1))          # sublane broadcast across batch
    o_ref[...] = (x_ref[...] + pe).astype(o_ref.dtype)


def positional_encoding_forward(x: jnp.ndarray, pe_table: jnp.ndarray,
                                *, promote: bool = True) -> jnp.ndarray:
    """x: (B, S, D); pe_table: (max_len, D). Returns x + pe_table[:S] (broadcast over B).

    promote=True matches PyTorch dtype promotion (bf16 x + f32 pe -> f32 out).
    promote=False is a bandwidth fast path: pe is cast to x.dtype and the
    output stays in x.dtype (intentional deviation from PyTorch).
    """
    B, S, D = x.shape
    max_len, d_model = pe_table.shape
    assert d_model == D and S <= max_len

    if promote:
        out_dtype = jnp.result_type(x.dtype, pe_table.dtype)
    else:
        out_dtype = x.dtype
        pe_table = pe_table.astype(x.dtype)

    x_isz = jnp.dtype(x.dtype).itemsize
    pe_isz = jnp.dtype(pe_table.dtype).itemsize
    out_isz = jnp.dtype(out_dtype).itemsize

    # One-time (S, D) slice so both operands share the same lane extent.
    pe_s = pe_table[:S, :]

    # Small-batch sublane folding: pack batch*g rows per tile.
    target_rows = max(_sublanes(x.dtype), _sublanes(out_dtype))
    g = _fold_factor(B, S, target_rows)

    rows = B * g
    lane_len = (S // g) * D

    x2 = x.reshape(rows, lane_len)            # free contiguous reshape
    pe2 = pe_s.reshape(g, lane_len)

    tl = _choose_tile(lane_len, rows, g, x.dtype, pe_table.dtype, out_dtype)
    grid = (pl.cdiv(lane_len, tl),)

    kernel = functools.partial(_pe_add_kernel, batch=B)

    out2 = pl.pallas_call(
        kernel,
        out_shape=jax.ShapeDtypeStruct((rows, lane_len), out_dtype),
        grid_spec=pltpu.PrefetchScalarGridSpec(
            num_scalar_prefetch=0,
            grid=grid,
            in_specs=[
                pl.BlockSpec((rows, tl), lambda l: (0, l)),   # x tile
                pl.BlockSpec((g, tl), lambda l: (0, l)),      # PE tile (streamed once)
            ],
            out_specs=pl.BlockSpec((rows, tl), lambda l: (0, l)),
        ),
        compiler_params=pltpu.CompilerParams(
            dimension_semantics=("parallel",),     # shardable across v7x's 2 TCs
            vmem_limit_bytes=32 * 1024 * 1024,     # safe on v5e/v6e/v7x
        ),
        cost_estimate=pl.CostEstimate(
            flops=B * S * D,
            transcendentals=0,
            bytes_accessed=B * S * D * x_isz + S * D * pe_isz + B * S * D * out_isz,
        ),
    )(x2, pe2)

    return out2.reshape(B, S, D)


if __name__ == "__main__":
    B, S, D = 2, 8, 32
    MAX_LEN = 128  # small max_len for the synthetic example (module default is 10000)

    key = jax.random.PRNGKey(0)
    x = jax.random.normal(key, (B, S, D), dtype=jnp.float32)

    pe_table = _build_pe_table(D, max_len=MAX_LEN)

    fwd = jax.jit(positional_encoding_forward)
    out = jax.block_until_ready(fwd(x, pe_table))

    # Reference check in plain JAX.
    ref = x + pe_table[:S, :][None, :, :]
    np.testing.assert_allclose(np.asarray(out), np.asarray(ref), rtol=1e-6, atol=1e-6)

    print("KERNEL_OK")
</pallas_src>

<mosaic_0001>
module attributes {stable_mosaic.version = 11 : i64} {
  func.func @_pe_add_kernel(%arg0: i32, %arg1: memref<8x64xf32, #tpu.memory_space<vmem>>, %arg2: memref<4x64xf32, #tpu.memory_space<vmem>>, %arg3: memref<8x64xf32, #tpu.memory_space<vmem>>) attributes {dimension_semantics = [#tpu.dimension_semantics<parallel>], iteration_bounds = array<i64: 1>, scalar_prefetch = 0 : i64, scratch_operands = 0 : i64, tpu.core_type = #tpu.core_type<tc>, window_params = [{transform_indices = @transform_0, window_bounds = array<i64: 8, 64>}, {transform_indices = @transform_1, window_bounds = array<i64: 4, 64>}, {transform_indices = @transform_2, window_bounds = array<i64: 8, 64>}]} {
    %c0 = arith.constant 0 : index
    %c0_0 = arith.constant 0 : index
    %0 = vector.load %arg2[%c0, %c0_0] : memref<4x64xf32, #tpu.memory_space<vmem>>, vector<4x64xf32>
    %1 = tpu.concatenate %0, %0 in 0 : vector<4x64xf32>, vector<4x64xf32> -> vector<8x64xf32>
    %c0_1 = arith.constant 0 : index
    %c0_2 = arith.constant 0 : index
    %2 = vector.load %arg1[%c0_1, %c0_2] : memref<8x64xf32, #tpu.memory_space<vmem>>, vector<8x64xf32>
    %3 = arith.addf %2, %1 : vector<8x64xf32>
    %c0_3 = arith.constant 0 : index
    %c0_4 = arith.constant 0 : index
    %4 = vector.load %arg3[%c0_3, %c0_4] : memref<8x64xf32, #tpu.memory_space<vmem>>, vector<8x64xf32>
    tpu.vector_store %arg3[%c0_3, %c0_4], %3 {strides = array<i32>} : memref<8x64xf32, #tpu.memory_space<vmem>>, vector<8x64xf32>,
    return
  }
  func.func @transform_0(%arg0: i32) -> (i32, i32) {
    %c0_i32 = arith.constant 0 : i32
    %c0_i32_0 = arith.constant 0 : i32
    return %c0_i32, %arg0 : i32, i32
  }
  func.func @transform_1(%arg0: i32) -> (i32, i32) {
    %c0_i32 = arith.constant 0 : i32
    %c0_i32_0 = arith.constant 0 : i32
    return %c0_i32, %arg0 : i32, i32
  }
  func.func @transform_2(%arg0: i32) -> (i32, i32) {
    %c0_i32 = arith.constant 0 : i32
    %c0_i32_0 = arith.constant 0 : i32
    return %c0_i32, %arg0 : i32, i32
  }
}

</mosaic_0001>

<llo_original>
// kernel: positional_encoding_forward.1
$region0: #{positional_encoding_forward.1}
  #allocation0 [shape = 'u32[]', space=smem, size = 0x4, offset = 0x4, fixed_abs, tag = 'smem constant byte address 0x4 - core index']
  #allocation1 [shape = 'u32[144,128]{1,0:T(1,128)}', space=vmem, size = 0x12000, scoped, tag = 'internal scratch']
  %s0 = inlined_call_operand.vmem [shape: f32[8,64], index: 0, kind: input, shape index: {}]
  %s1 = inlined_call_operand.vmem [shape: f32[4,64], index: 1, kind: input, shape index: {}]
  %s2 = inlined_call_operand.vmem [shape: f32[8,64], index: 2, kind: output, shape index: {}]
  %s3 = sld [smem:[#allocation0]]
  $region18: #{positional_encoding_forward.1} parent=0
    _
  %s5 = ssub.s32 1, %s3
  %s6 = scalar_select 0, %s5, %s3
  // Predicated region
  $region2: #{positional_encoding_forward.1} parent=0 // pred_check
    _
  $region3: #{positional_encoding_forward.1} parent=0 // pred_check_branch
    %8 = sbr.rel (0) target = $region5
  $region4: #{positional_encoding_forward.1} parent=0 // pred_region
    _
  $region5: #{positional_encoding_forward.1} parent=0 // pred_fallthru
    _
  // Predicated region
  $region6: #{positional_encoding_forward.1} parent=0 // pred_check
    _
  $region7: #{positional_encoding_forward.1} parent=0 // pred_check_branch
    %10 = sbr.rel (0) target = $region9
  $region8: #{positional_encoding_forward.1} parent=0 // pred_region
    _
  $region9: #{positional_encoding_forward.1} parent=0 // pred_fallthru
    _
  %v11 = vld [vmem:[%s1] sm:$0xf]
  %v13 = vrot.slane %v11, 4
  %vm15 = vcmask 1043456
  %v16 = vsel %vm15, %v11, %v13
  %v17 = vld [vmem:[%s0] sm:$0xff]
  %v18 = vadd.f32 %v17, %v16
  %vm19 = vcmask 523264
  %20 = vst.msk [vmem:[%s2] sm:$0xff] %vm19, %v18
  // Predicated region
  $region10: #{positional_encoding_forward.1} parent=0 // pred_check
    _
  $region11: #{positional_encoding_forward.1} parent=0 // pred_check_branch
    %22 = sbr.rel (0) target = $region13
  $region12: #{positional_encoding_forward.1} parent=0 // pred_region
    _
  $region13: #{positional_encoding_forward.1} parent=0 // pred_fallthru
    _
  // Predicated region
  $region14: #{positional_encoding_forward.1} parent=0 // pred_check
    _
  $region15: #{positional_encoding_forward.1} parent=0 // pred_check_branch
    %24 = sbr.rel (0) target = $region17
  $region16: #{positional_encoding_forward.1} parent=0 // pred_region
    _
  $region17: #{positional_encoding_forward.1} parent=0 // pred_fallthru
    _

</llo_original>
